<compile_context>
chip_gen: v7x
topology: tpu7x:2x2x1
jax: 0.10.0
libtpu: 0.0.40
codegen_flags: <defaults>
</compile_context>

<pallas_src>
import functools

import jax
import jax.numpy as jnp
import numpy as np
from jax.experimental import pallas as pl
from jax.experimental.pallas import tpu as pltpu


def _make_dense_kernel(x_ref, w_ref, b_ref, m_ref, o_ref, *,
                       H, W, Cin, G, K, B_tile, mxu_dtype):
    """One batch block per grid step (everything lane-dense over H*W).

    x_ref : (B_tile, Cin, H*W)  input images, f32
    w_ref : (K*K, G, Cin)       BN-folded weights, one (G, Cin) tile per tap
    b_ref : (G, 1)              BN-folded bias, f32
    m_ref : (K*K, 1, H*W)       per-tap border masks (1.0 inside / 0.0 outside)
    o_ref : (B_tile, G, H*W)    relu(bn(conv)) output
    """
    HW = H * W
    pad = (K - 1) // 2

    # Static per-tap flat shifts, hoisted out of the per-image loop.
    tap_shifts = [(kh * K + kw, (kh - pad) * W + (kw - pad))
                  for kh in range(K) for kw in range(K)]

    bias = b_ref[...]                                    # (G, 1) f32

    for b in range(B_tile):                              # unrolled, B_tile small
        x_img = x_ref[b]                                 # (Cin, H*W) f32
        acc = jnp.zeros((G, HW), dtype=jnp.float32)      # lane-dense, ~2 vregs
        for t, shift in tap_shifts:
            if shift == 0:
                xs = x_img
            else:
                # Flattened (dh, dw) shift == static lane shift of the image.
                # On this lane-dense layout jnp.roll lowers to in-register
                # lane shifts (same XLU path as pltpu.roll, which is a
                # drop-in alternative); the precomputed mask zeroes the
                # wrapped / out-of-image pixels, so no padded HBM copy and
                # no (8,128)-crossing slices are needed.
                xs = jnp.roll(x_img, -shift, axis=1) * m_ref[t]
            # bf16 MXU operands, f32 accumulation (elementwise work stays f32).
            acc += jnp.dot(w_ref[t], xs.astype(mxu_dtype),
                           preferred_element_type=jnp.float32)
        o_ref[b] = jnp.maximum(acc + bias, 0.0).astype(o_ref.dtype)


def _border_masks(H, W, K):
    """Per-tap validity masks over the flattened H*W pixel axis."""
    pad = (K - 1) // 2
    ii, jj = np.meshgrid(np.arange(H), np.arange(W), indexing="ij")
    masks = np.zeros((K * K, 1, H * W), np.float32)
    for kh in range(K):
        for kw in range(K):
            dh, dw = kh - pad, kw - pad
            valid = ((ii + dh >= 0) & (ii + dh < H) &
                     (jj + dw >= 0) & (jj + dw < W))
            masks[kh * K + kw, 0] = valid.reshape(-1).astype(np.float32)
    return jnp.asarray(masks)


def _pick_batch_tile(n):
    """Images per grid step: amortize per-step overhead, but keep >= 2
    "parallel" grid blocks whenever n >= 2 so both v7x TensorCores get work."""
    if n <= 2:
        return 1
    best = 1
    for bt in range(1, min(n // 2, 8) + 1):
        if n % bt == 0:
            best = bt
    return best


def make_dense_forward(x_nchw, w_oihw, gamma, beta, run_mean, run_var,
                       eps=1e-5, mxu_dtype=jnp.bfloat16):
    """x_nchw: (N, Cin, H, W) float32.  Returns (N, Cin+G, H, W)."""
    N, Cin, H, W = x_nchw.shape
    G, _, K, _ = w_oihw.shape
    HW = H * W

    # Fold inference-mode BatchNorm into the conv weights + a per-channel bias
    # (the conv itself is bias-free).
    inv_std = gamma / jnp.sqrt(run_var + eps)                      # (G,)
    w_scaled = w_oihw * inv_std[:, None, None, None]               # (G, Cin, K, K)
    # One (G, Cin) MXU tile per tap, tap index t = kh*K + kw; bf16 operands.
    w_taps = jnp.transpose(w_scaled, (2, 3, 0, 1)).reshape(K * K, G, Cin)
    w_taps = w_taps.astype(mxu_dtype)
    b_folded = (beta - run_mean * inv_std).reshape(G, 1).astype(jnp.float32)

    masks = _border_masks(H, W, K)                                 # (K*K, 1, HW)

    # Free contiguous reshape: pixels become the lane axis (no transpose/pad).
    x_flat = x_nchw.reshape(N, Cin, HW)

    B_tile = _pick_batch_tile(N)
    grid = (N // B_tile,)

    kernel = functools.partial(_make_dense_kernel, H=H, W=W, Cin=Cin, G=G,
                               K=K, B_tile=B_tile, mxu_dtype=mxu_dtype)

    conv_flat = pl.pallas_call(
        kernel,
        out_shape=jax.ShapeDtypeStruct((N, G, HW), x_nchw.dtype),
        grid_spec=pltpu.PrefetchScalarGridSpec(
            num_scalar_prefetch=0,
            grid=grid,
            in_specs=[
                pl.BlockSpec((B_tile, Cin, HW), lambda n: (n, 0, 0)),
                pl.BlockSpec((K * K, G, Cin), lambda n: (0, 0, 0)),
                pl.BlockSpec((G, 1), lambda n: (0, 0)),
                pl.BlockSpec((K * K, 1, HW), lambda n: (0, 0, 0)),
            ],
            out_specs=pl.BlockSpec((B_tile, G, HW), lambda n: (n, 0, 0)),
        ),
        # TODO(synk): at real DenseNet sizes re-derive the per-block VMEM
        # budget for v7x (64 MiB): tile H into row strips with a halo and set
        # pltpu.CompilerParams(vmem_limit_bytes=...) explicitly.
        compiler_params=pltpu.CompilerParams(
            dimension_semantics=("parallel",)),
    )(x_flat, w_taps, b_folded, masks)

    conv_out = conv_flat.reshape(N, G, H, W)
    # torch.cat((x, out), 1): contiguous NCHW axis-1 concat stays in the
    # wrapper so x never round-trips through the kernel's VMEM.
    return jnp.concatenate([x_nchw, conv_out], axis=1)


def _reference(x_nchw, w_oihw, gamma, beta, run_mean, run_var, eps=1e-5):
    """Pure-JAX f32 reference (conv + eval-mode BN + relu + channel concat)."""
    G, _, K, _ = w_oihw.shape
    pad = (K - 1) // 2
    conv = jax.lax.conv_general_dilated(
        x_nchw, w_oihw, window_strides=(1, 1),
        padding=((pad, pad), (pad, pad)),
        dimension_numbers=("NCHW", "OIHW", "NCHW"))
    inv_std = 1.0 / jnp.sqrt(run_var + eps)
    bn = (conv - run_mean[None, :, None, None]) \
        * (gamma * inv_std)[None, :, None, None] + beta[None, :, None, None]
    act = jnp.maximum(bn, 0.0)
    return jnp.concatenate([x_nchw, act], axis=1)


if __name__ == "__main__":
    nChannels, growthRate, ksize = 4, 8, 3
    N, H, W = 2, 16, 16

    key = jax.random.PRNGKey(0)
    kx, kw = jax.random.split(key)

    x = jax.random.normal(kx, (N, nChannels, H, W), dtype=jnp.float32)

    # Conv2d weight (out, in, kH, kW), bias=False; kaiming-ish scaled normal.
    fan_in = nChannels * ksize * ksize
    w = jax.random.normal(kw, (growthRate, nChannels, ksize, ksize),
                          dtype=jnp.float32) * (2.0 / fan_in) ** 0.5

    # BatchNorm2d default parameters / running stats (inference mode).
    gamma = jnp.ones((growthRate,), jnp.float32)
    beta = jnp.zeros((growthRate,), jnp.float32)
    run_mean = jnp.zeros((growthRate,), jnp.float32)
    run_var = jnp.ones((growthRate,), jnp.float32)

    fwd = jax.jit(make_dense_forward)
    out = jax.block_until_ready(fwd(x, w, gamma, beta, run_mean, run_var))

    ref = _reference(x, w, gamma, beta, run_mean, run_var)
    assert out.shape == (N, nChannels + growthRate, H, W), out.shape
    # Pass-through channels are copied outside the kernel -> exact.
    assert jnp.array_equal(out[:, :nChannels], x)
    # Conv channels use bf16 MXU operands with f32 accumulation.
    err = float(jnp.max(jnp.abs(out[:, nChannels:] - ref[:, nChannels:])))
    assert err < 3e-2, err

    print("KERNEL_OK")
</pallas_src>

<mosaic_0001>
module attributes {stable_mosaic.version = 11 : i64} {
  func.func @_make_dense_kernel(%arg0: i32, %arg1: memref<1x4x256xf32, #tpu.memory_space<vmem>>, %arg2: memref<9x8x4xbf16, #tpu.memory_space<vmem>>, %arg3: memref<8x1xf32, #tpu.memory_space<vmem>>, %arg4: memref<9x1x256xf32, #tpu.memory_space<vmem>>, %arg5: memref<1x8x256xf32, #tpu.memory_space<vmem>>) attributes {dimension_semantics = [#tpu.dimension_semantics<parallel>], iteration_bounds = array<i64: 2>, scalar_prefetch = 0 : i64, scratch_operands = 0 : i64, tpu.core_type = #tpu.core_type<tc>, window_params = [{transform_indices = @transform_0, window_bounds = array<i64: 1, 4, 256>}, {pipeline_mode = #tpu.pipeline_mode<synchronous>, transform_indices = @transform_1, window_bounds = array<i64: 9, 8, 4>}, {pipeline_mode = #tpu.pipeline_mode<synchronous>, transform_indices = @transform_2, window_bounds = array<i64: 8, 1>}, {pipeline_mode = #tpu.pipeline_mode<synchronous>, transform_indices = @transform_3, window_bounds = array<i64: 9, 1, 256>}, {transform_indices = @transform_4, window_bounds = array<i64: 1, 8, 256>}]} {
    %c0 = arith.constant 0 : index
    %c0_0 = arith.constant 0 : index
    %0 = vector.load %arg3[%c0, %c0_0] : memref<8x1xf32, #tpu.memory_space<vmem>>, vector<8x1xf32>
    %c0_1 = arith.constant 0 : index
    %c0_2 = arith.constant 0 : index
    %c0_3 = arith.constant 0 : index
    %1 = vector.load %arg1[%c0_1, %c0_2, %c0_3] : memref<1x4x256xf32, #tpu.memory_space<vmem>>, vector<1x4x256xf32>
    %2 = vector.shape_cast %1 : vector<1x4x256xf32> to vector<4x256xf32>
    %cst = arith.constant 0.000000e+00 : f32
    %3 = vector.broadcast %cst : f32 to vector<8x256xf32>
    %4 = vector.extract_strided_slice %2 {offsets = [0, 239], sizes = [4, 17], strides = [1, 1]} : vector<4x256xf32> to vector<4x17xf32>
    %5 = vector.extract_strided_slice %2 {offsets = [0, 0], sizes = [4, 239], strides = [1, 1]} : vector<4x256xf32> to vector<4x239xf32>
    %6 = tpu.concatenate %4, %5 in 1 : vector<4x17xf32>, vector<4x239xf32> -> vector<4x256xf32>
    %c0_4 = arith.constant 0 : index
    %c0_5 = arith.constant 0 : index
    %c0_6 = arith.constant 0 : index
    %7 = vector.load %arg4[%c0_4, %c0_5, %c0_6] : memref<9x1x256xf32, #tpu.memory_space<vmem>>, vector<1x1x256xf32>
    %8 = vector.shape_cast %7 : vector<1x1x256xf32> to vector<1x256xf32>
    %9 = vector.broadcast %8 : vector<1x256xf32> to vector<4x256xf32>
    %10 = arith.mulf %6, %9 : vector<4x256xf32>
    %c0_7 = arith.constant 0 : index
    %c0_8 = arith.constant 0 : index
    %c0_9 = arith.constant 0 : index
    %11 = vector.load %arg2[%c0_7, %c0_8, %c0_9] : memref<9x8x4xbf16, #tpu.memory_space<vmem>>, vector<1x8x4xbf16>
    %12 = vector.shape_cast %11 : vector<1x8x4xbf16> to vector<8x4xbf16>
    %13 = arith.truncf %10 : vector<4x256xf32> to vector<4x256xbf16>
    %cst_10 = arith.constant dense<0.000000e+00> : vector<8x256xf32>
    %14 = tpu.matmul %12, %13, %cst_10 {dimension_numbers = #tpu.dot_dimension_numbers<[1], [0], [0], [1], [0, 0, 1, 1], [], []>} : vector<8x4xbf16>, vector<4x256xbf16>, vector<8x256xf32> -> vector<8x256xf32>
    %15 = arith.addf %3, %14 : vector<8x256xf32>
    %16 = vector.extract_strided_slice %2 {offsets = [0, 240], sizes = [4, 16], strides = [1, 1]} : vector<4x256xf32> to vector<4x16xf32>
    %17 = vector.extract_strided_slice %2 {offsets = [0, 0], sizes = [4, 240], strides = [1, 1]} : vector<4x256xf32> to vector<4x240xf32>
    %18 = tpu.concatenate %16, %17 in 1 : vector<4x16xf32>, vector<4x240xf32> -> vector<4x256xf32>
    %c1 = arith.constant 1 : index
    %c0_11 = arith.constant 0 : index
    %c0_12 = arith.constant 0 : index
    %19 = vector.load %arg4[%c1, %c0_11, %c0_12] : memref<9x1x256xf32, #tpu.memory_space<vmem>>, vector<1x1x256xf32>
    %20 = vector.shape_cast %19 : vector<1x1x256xf32> to vector<1x256xf32>
    %21 = vector.broadcast %20 : vector<1x256xf32> to vector<4x256xf32>
    %22 = arith.mulf %18, %21 : vector<4x256xf32>
    %c1_13 = arith.constant 1 : index
    %c0_14 = arith.constant 0 : index
    %c0_15 = arith.constant 0 : index
    %23 = vector.load %arg2[%c1_13, %c0_14, %c0_15] : memref<9x8x4xbf16, #tpu.memory_space<vmem>>, vector<1x8x4xbf16>
    %24 = vector.shape_cast %23 : vector<1x8x4xbf16> to vector<8x4xbf16>
    %25 = arith.truncf %22 : vector<4x256xf32> to vector<4x256xbf16>
    %cst_16 = arith.constant dense<0.000000e+00> : vector<8x256xf32>
    %26 = tpu.matmul %24, %25, %cst_16 {dimension_numbers = #tpu.dot_dimension_numbers<[1], [0], [0], [1], [0, 0, 1, 1], [], []>} : vector<8x4xbf16>, vector<4x256xbf16>, vector<8x256xf32> -> vector<8x256xf32>
    %27 = arith.addf %15, %26 : vector<8x256xf32>
    %28 = vector.extract_strided_slice %2 {offsets = [0, 241], sizes = [4, 15], strides = [1, 1]} : vector<4x256xf32> to vector<4x15xf32>
    %29 = vector.extract_strided_slice %2 {offsets = [0, 0], sizes = [4, 241], strides = [1, 1]} : vector<4x256xf32> to vector<4x241xf32>
    %30 = tpu.concatenate %28, %29 in 1 : vector<4x15xf32>, vector<4x241xf32> -> vector<4x256xf32>
    %c2 = arith.constant 2 : index
    %c0_17 = arith.constant 0 : index
    %c0_18 = arith.constant 0 : index
    %31 = vector.load %arg4[%c2, %c0_17, %c0_18] : memref<9x1x256xf32, #tpu.memory_space<vmem>>, vector<1x1x256xf32>
    %32 = vector.shape_cast %31 : vector<1x1x256xf32> to vector<1x256xf32>
    %33 = vector.broadcast %32 : vector<1x256xf32> to vector<4x256xf32>
    %34 = arith.mulf %30, %33 : vector<4x256xf32>
    %c2_19 = arith.constant 2 : index
    %c0_20 = arith.constant 0 : index
    %c0_21 = arith.constant 0 : index
    %35 = vector.load %arg2[%c2_19, %c0_20, %c0_21] : memref<9x8x4xbf16, #tpu.memory_space<vmem>>, vector<1x8x4xbf16>
    %36 = vector.shape_cast %35 : vector<1x8x4xbf16> to vector<8x4xbf16>
    %37 = arith.truncf %34 : vector<4x256xf32> to vector<4x256xbf16>
    %cst_22 = arith.constant dense<0.000000e+00> : vector<8x256xf32>
    %38 = tpu.matmul %36, %37, %cst_22 {dimension_numbers = #tpu.dot_dimension_numbers<[1], [0], [0], [1], [0, 0, 1, 1], [], []>} : vector<8x4xbf16>, vector<4x256xbf16>, vector<8x256xf32> -> vector<8x256xf32>
    %39 = arith.addf %27, %38 : vector<8x256xf32>
    %40 = vector.extract_strided_slice %2 {offsets = [0, 255], sizes = [4, 1], strides = [1, 1]} : vector<4x256xf32> to vector<4x1xf32>
    %41 = vector.extract_strided_slice %2 {offsets = [0, 0], sizes = [4, 255], strides = [1, 1]} : vector<4x256xf32> to vector<4x255xf32>
    %42 = tpu.concatenate %40, %41 in 1 : vector<4x1xf32>, vector<4x255xf32> -> vector<4x256xf32>
    %c3 = arith.constant 3 : index
    %c0_23 = arith.constant 0 : index
    %c0_24 = arith.constant 0 : index
    %43 = vector.load %arg4[%c3, %c0_23, %c0_24] : memref<9x1x256xf32, #tpu.memory_space<vmem>>, vector<1x1x256xf32>
    %44 = vector.shape_cast %43 : vector<1x1x256xf32> to vector<1x256xf32>
    %45 = vector.broadcast %44 : vector<1x256xf32> to vector<4x256xf32>
    %46 = arith.mulf %42, %45 : vector<4x256xf32>
    %c3_25 = arith.constant 3 : index
    %c0_26 = arith.constant 0 : index
    %c0_27 = arith.constant 0 : index
    %47 = vector.load %arg2[%c3_25, %c0_26, %c0_27] : memref<9x8x4xbf16, #tpu.memory_space<vmem>>, vector<1x8x4xbf16>
    %48 = vector.shape_cast %47 : vector<1x8x4xbf16> to vector<8x4xbf16>
    %49 = arith.truncf %46 : vector<4x256xf32> to vector<4x256xbf16>
    %cst_28 = arith.constant dense<0.000000e+00> : vector<8x256xf32>
    %50 = tpu.matmul %48, %49, %cst_28 {dimension_numbers = #tpu.dot_dimension_numbers<[1], [0], [0], [1], [0, 0, 1, 1], [], []>} : vector<8x4xbf16>, vector<4x256xbf16>, vector<8x256xf32> -> vector<8x256xf32>
    %51 = arith.addf %39, %50 : vector<8x256xf32>
    %c4 = arith.constant 4 : index
    %c0_29 = arith.constant 0 : index
    %c0_30 = arith.constant 0 : index
    %52 = vector.load %arg2[%c4, %c0_29, %c0_30] : memref<9x8x4xbf16, #tpu.memory_space<vmem>>, vector<1x8x4xbf16>
    %53 = vector.shape_cast %52 : vector<1x8x4xbf16> to vector<8x4xbf16>
    %54 = arith.truncf %2 : vector<4x256xf32> to vector<4x256xbf16>
    %cst_31 = arith.constant dense<0.000000e+00> : vector<8x256xf32>
    %55 = tpu.matmul %53, %54, %cst_31 {dimension_numbers = #tpu.dot_dimension_numbers<[1], [0], [0], [1], [0, 0, 1, 1], [], []>} : vector<8x4xbf16>, vector<4x256xbf16>, vector<8x256xf32> -> vector<8x256xf32>
    %56 = arith.addf %51, %55 : vector<8x256xf32>
    %57 = vector.extract_strided_slice %2 {offsets = [0, 1], sizes = [4, 255], strides = [1, 1]} : vector<4x256xf32> to vector<4x255xf32>
    %58 = vector.extract_strided_slice %2 {offsets = [0, 0], sizes = [4, 1], strides = [1, 1]} : vector<4x256xf32> to vector<4x1xf32>
    %59 = tpu.concatenate %57, %58 in 1 : vector<4x255xf32>, vector<4x1xf32> -> vector<4x256xf32>
    %c5 = arith.constant 5 : index
    %c0_32 = arith.constant 0 : index
    %c0_33 = arith.constant 0 : index
    %60 = vector.load %arg4[%c5, %c0_32, %c0_33] : memref<9x1x256xf32, #tpu.memory_space<vmem>>, vector<1x1x256xf32>
    %61 = vector.shape_cast %60 : vector<1x1x256xf32> to vector<1x256xf32>
    %62 = vector.broadcast %61 : vector<1x256xf32> to vector<4x256xf32>
    %63 = arith.mulf %59, %62 : vector<4x256xf32>
    %c5_34 = arith.constant 5 : index
    %c0_35 = arith.constant 0 : index
    %c0_36 = arith.constant 0 : index
    %64 = vector.load %arg2[%c5_34, %c0_35, %c0_36] : memref<9x8x4xbf16, #tpu.memory_space<vmem>>, vector<1x8x4xbf16>
    %65 = vector.shape_cast %64 : vector<1x8x4xbf16> to vector<8x4xbf16>
    %66 = arith.truncf %63 : vector<4x256xf32> to vector<4x256xbf16>
    %cst_37 = arith.constant dense<0.000000e+00> : vector<8x256xf32>
    %67 = tpu.matmul %65, %66, %cst_37 {dimension_numbers = #tpu.dot_dimension_numbers<[1], [0], [0], [1], [0, 0, 1, 1], [], []>} : vector<8x4xbf16>, vector<4x256xbf16>, vector<8x256xf32> -> vector<8x256xf32>
    %68 = arith.addf %56, %67 : vector<8x256xf32>
    %69 = vector.extract_strided_slice %2 {offsets = [0, 15], sizes = [4, 241], strides = [1, 1]} : vector<4x256xf32> to vector<4x241xf32>
    %70 = vector.extract_strided_slice %2 {offsets = [0, 0], sizes = [4, 15], strides = [1, 1]} : vector<4x256xf32> to vector<4x15xf32>
    %71 = tpu.concatenate %69, %70 in 1 : vector<4x241xf32>, vector<4x15xf32> -> vector<4x256xf32>
    %c6 = arith.constant 6 : index
    %c0_38 = arith.constant 0 : index
    %c0_39 = arith.constant 0 : index
    %72 = vector.load %arg4[%c6, %c0_38, %c0_39] : memref<9x1x256xf32, #tpu.memory_space<vmem>>, vector<1x1x256xf32>
    %73 = vector.shape_cast %72 : vector<1x1x256xf32> to vector<1x256xf32>
    %74 = vector.broadcast %73 : vector<1x256xf32> to vector<4x256xf32>
    %75 = arith.mulf %71, %74 : vector<4x256xf32>
    %c6_40 = arith.constant 6 : index
    %c0_41 = arith.constant 0 : index
    %c0_42 = arith.constant 0 : index
    %76 = vector.load %arg2[%c6_40, %c0_41, %c0_42] : memref<9x8x4xbf16, #tpu.memory_space<vmem>>, vector<1x8x4xbf16>
    %77 = vector.shape_cast %76 : vector<1x8x4xbf16> to vector<8x4xbf16>
    %78 = arith.truncf %75 : vector<4x256xf32> to vector<4x256xbf16>
    %cst_43 = arith.constant dense<0.000000e+00> : vector<8x256xf32>
    %79 = tpu.matmul %77, %78, %cst_43 {dimension_numbers = #tpu.dot_dimension_numbers<[1], [0], [0], [1], [0, 0, 1, 1], [], []>} : vector<8x4xbf16>, vector<4x256xbf16>, vector<8x256xf32> -> vector<8x256xf32>
    %80 = arith.addf %68, %79 : vector<8x256xf32>
    %81 = vector.extract_strided_slice %2 {offsets = [0, 16], sizes = [4, 240], strides = [1, 1]} : vector<4x256xf32> to vector<4x240xf32>
    %82 = vector.extract_strided_slice %2 {offsets = [0, 0], sizes = [4, 16], strides = [1, 1]} : vector<4x256xf32> to vector<4x16xf32>
    %83 = tpu.concatenate %81, %82 in 1 : vector<4x240xf32>, vector<4x16xf32> -> vector<4x256xf32>
    %c7 = arith.constant 7 : index
    %c0_44 = arith.constant 0 : index
    %c0_45 = arith.constant 0 : index
    %84 = vector.load %arg4[%c7, %c0_44, %c0_45] : memref<9x1x256xf32, #tpu.memory_space<vmem>>, vector<1x1x256xf32>
    %85 = vector.shape_cast %84 : vector<1x1x256xf32> to vector<1x256xf32>
    %86 = vector.broadcast %85 : vector<1x256xf32> to vector<4x256xf32>
    %87 = arith.mulf %83, %86 : vector<4x256xf32>
    %c7_46 = arith.constant 7 : index
    %c0_47 = arith.constant 0 : index
    %c0_48 = arith.constant 0 : index
    %88 = vector.load %arg2[%c7_46, %c0_47, %c0_48] : memref<9x8x4xbf16, #tpu.memory_space<vmem>>, vector<1x8x4xbf16>
    %89 = vector.shape_cast %88 : vector<1x8x4xbf16> to vector<8x4xbf16>
    %90 = arith.truncf %87 : vector<4x256xf32> to vector<4x256xbf16>
    %cst_49 = arith.constant dense<0.000000e+00> : vector<8x256xf32>
    %91 = tpu.matmul %89, %90, %cst_49 {dimension_numbers = #tpu.dot_dimension_numbers<[1], [0], [0], [1], [0, 0, 1, 1], [], []>} : vector<8x4xbf16>, vector<4x256xbf16>, vector<8x256xf32> -> vector<8x256xf32>
    %92 = arith.addf %80, %91 : vector<8x256xf32>
    %93 = vector.extract_strided_slice %2 {offsets = [0, 17], sizes = [4, 239], strides = [1, 1]} : vector<4x256xf32> to vector<4x239xf32>
    %94 = vector.extract_strided_slice %2 {offsets = [0, 0], sizes = [4, 17], strides = [1, 1]} : vector<4x256xf32> to vector<4x17xf32>
    %95 = tpu.concatenate %93, %94 in 1 : vector<4x239xf32>, vector<4x17xf32> -> vector<4x256xf32>
    %c8 = arith.constant 8 : index
    %c0_50 = arith.constant 0 : index
    %c0_51 = arith.constant 0 : index
    %96 = vector.load %arg4[%c8, %c0_50, %c0_51] : memref<9x1x256xf32, #tpu.memory_space<vmem>>, vector<1x1x256xf32>
    %97 = vector.shape_cast %96 : vector<1x1x256xf32> to vector<1x256xf32>
    %98 = vector.broadcast %97 : vector<1x256xf32> to vector<4x256xf32>
    %99 = arith.mulf %95, %98 : vector<4x256xf32>
    %c8_52 = arith.constant 8 : index
    %c0_53 = arith.constant 0 : index
    %c0_54 = arith.constant 0 : index
    %100 = vector.load %arg2[%c8_52, %c0_53, %c0_54] : memref<9x8x4xbf16, #tpu.memory_space<vmem>>, vector<1x8x4xbf16>
    %101 = vector.shape_cast %100 : vector<1x8x4xbf16> to vector<8x4xbf16>
    %102 = arith.truncf %99 : vector<4x256xf32> to vector<4x256xbf16>
    %cst_55 = arith.constant dense<0.000000e+00> : vector<8x256xf32>
    %103 = tpu.matmul %101, %102, %cst_55 {dimension_numbers = #tpu.dot_dimension_numbers<[1], [0], [0], [1], [0, 0, 1, 1], [], []>} : vector<8x4xbf16>, vector<4x256xbf16>, vector<8x256xf32> -> vector<8x256xf32>
    %104 = arith.addf %92, %103 : vector<8x256xf32>
    %105 = vector.broadcast %0 : vector<8x1xf32> to vector<8x256xf32>
    %106 = arith.addf %104, %105 : vector<8x256xf32>
    %cst_56 = arith.constant 0.000000e+00 : f32
    %107 = vector.broadcast %cst_56 : f32 to vector<8x256xf32>
    %108 = arith.maximumf %106, %107 : vector<8x256xf32>
    %c0_57 = arith.constant 0 : index
    %c0_58 = arith.constant 0 : index
    %c0_59 = arith.constant 0 : index
    %109 = vector.load %arg5[%c0_57, %c0_58, %c0_59] : memref<1x8x256xf32, #tpu.memory_space<vmem>>, vector<1x8x256xf32>
    %110 = vector.shape_cast %109 : vector<1x8x256xf32> to vector<8x256xf32>
    %111 = vector.shape_cast %108 : vector<8x256xf32> to vector<1x8x256xf32>
    tpu.vector_store %arg5[%c0_57, %c0_58, %c0_59], %111 {strides = array<i32>} : memref<1x8x256xf32, #tpu.memory_space<vmem>>, vector<1x8x256xf32>,
    return
  }
  func.func @transform_0(%arg0: i32) -> (i32, i32, i32) {
    %c0_i32 = arith.constant 0 : i32
    %c0_i32_0 = arith.constant 0 : i32
    %c0_i32_1 = arith.constant 0 : i32
    return %arg0, %c0_i32, %c0_i32_0 : i32, i32, i32
  }
  func.func @transform_1(%arg0: i32) -> (i32, i32, i32) {
    %c0_i32 = arith.constant 0 : i32
    %c0_i32_0 = arith.constant 0 : i32
    %c0_i32_1 = arith.constant 0 : i32
    %c0_i32_2 = arith.constant 0 : i32
    return %c0_i32, %c0_i32_0, %c0_i32_1 : i32, i32, i32
  }
  func.func @transform_2(%arg0: i32) -> (i32, i32) {
    %c0_i32 = arith.constant 0 : i32
    %c0_i32_0 = arith.constant 0 : i32
    %c0_i32_1 = arith.constant 0 : i32
    return %c0_i32, %c0_i32_0 : i32, i32
  }
  func.func @transform_3(%arg0: i32) -> (i32, i32, i32) {
    %c0_i32 = arith.constant 0 : i32
    %c0_i32_0 = arith.constant 0 : i32
    %c0_i32_1 = arith.constant 0 : i32
    %c0_i32_2 = arith.constant 0 : i32
    return %c0_i32, %c0_i32_0, %c0_i32_1 : i32, i32, i32
  }
  func.func @transform_4(%arg0: i32) -> (i32, i32, i32) {
    %c0_i32 = arith.constant 0 : i32
    %c0_i32_0 = arith.constant 0 : i32
    %c0_i32_1 = arith.constant 0 : i32
    return %arg0, %c0_i32, %c0_i32_0 : i32, i32, i32
  }
}

</mosaic_0001>

<llo_original>
// kernel: make_dense_forward.1
$region0: #{make_dense_forward.1}
  #allocation0 [shape = 'u32[]', space=smem, size = 0x4, offset = 0x4, fixed_abs, tag = 'smem constant byte address 0x4 - core index']
  #allocation1 [shape = 'u32[144,128]{1,0:T(1,128)}', space=vmem, size = 0x12000, scoped, tag = 'internal scratch']
  %s0 = inlined_call_operand.vmem [shape: f32[2,4,256], index: 0, kind: input, shape index: {}]
  %s1 = inlined_call_operand.vmem [shape: bf16[9,8,4], index: 1, kind: input, shape index: {}]
  %s2 = inlined_call_operand.vmem [shape: f32[8,1], index: 2, kind: input, shape index: {}]
  %s3 = inlined_call_operand.vmem [shape: f32[9,1,256], index: 3, kind: input, shape index: {}]
  %s4 = inlined_call_operand.vmem [shape: f32[2,8,256], index: 4, kind: output, shape index: {}]
  %s5 = sld [smem:[#allocation0]]
  $region49: #{make_dense_forward.1} parent=0
    _
  %s7 = ssub.s32 1, %s5
  %s8 = scalar_select 0, %s7, %s5
  loop: start=0, step=1, limit=4
  $region2: #{make_dense_forward.1} parent=0 // loop_pre_header
    _
  $region3: #{make_dense_forward.1} parent=0 // loop_header
    %s10 = sphi 0, %s14
    %p11 = scmp.ge.s32.totalorder %s10, 4
    %s20 = sphi 0, %s22
    %s23 = sphi 0, %s20
    %s24 = sphi 0, %s23
    %s40 = sphi 0, %s24
    %s44 = sphi 0, %s44
    %s46 = sphi 0, %s44
    %s47 = sphi 0, %s46
    %s61 = sphi 0, %s47
    %s65 = sphi 0, %s65
    %s67 = sphi 0, %s65
    %s68 = sphi 0, %s67
    %s82 = sphi 0, %s68
    %s86 = sphi 0, %s86
    %s88 = sphi 0, %s86
    %s89 = sphi 0, %s88
    %s103 = sphi 0, %s89
    %s109 = sphi 0, %s111
    %s112 = sphi 0, %s109
    %s113 = sphi 0, %s112
    %s129 = sphi 0, %s113
  $region4: #{make_dense_forward.1} parent=0 // loop_header_branch
    %13 = sbr.rel (%p11) target = $region8
  $region5: #{make_dense_forward.1} parent=0 // loop_body
    %s15 = ssub.s32 %s10, 1
    %s16 = ssub.s32 %s10, 2
    %s17 = sadd.s32 %s10, 1
    %s18 = ssub.s32 %s10, %s17
    %p19 = scmp.eq.s32.totalorder %s18, 0
    %s21 = sadd.s32 %s20, 1
    %s22 = scalar_select %p19, %s20, %s21
    %p25 = pneg %p19
    %p26 = scmp.eq.s32.totalorder %s10, 1
    %p27 = por %p25, %p26
    %p28 = scmp.ne.s32.totalorder %s20, %s23
    %p29 = scmp.eq.s32.totalorder %s10, 0
    %p30 = por %p28, %p29
    %p31 = scmp.ne.s32.totalorder %s20, %s23
    %p32 = scmp.eq.s32.totalorder %s15, 1
    %p33 = por %p31, %p32
    %p34 = scmp.ne.s32.totalorder %s23, %s24
    %p35 = scmp.eq.s32.totalorder %s15, 0
    %p36 = por %p34, %p35
    %p37 = scmp.ne.s32.totalorder %s23, %s24
    %p38 = scmp.eq.s32.totalorder %s16, 1
    %p39 = por %p37, %p38
    %p41 = scmp.ne.s32.totalorder %s24, %s40
    %p42 = scmp.eq.s32.totalorder %s16, 0
    %p43 = por %p41, %p42
    %s45 = sadd.s32 %s44, 1
    %p48 = scmp.eq.s32.totalorder %s10, 1
    %p49 = scmp.ne.s32.totalorder %s44, %s46
    %p50 = scmp.eq.s32.totalorder %s10, 0
    %p51 = por %p49, %p50
    %p52 = scmp.ne.s32.totalorder %s44, %s46
    %p53 = scmp.eq.s32.totalorder %s15, 1
    %p54 = por %p52, %p53
    %p55 = scmp.ne.s32.totalorder %s46, %s47
    %p56 = scmp.eq.s32.totalorder %s15, 0
    %p57 = por %p55, %p56
    %p58 = scmp.ne.s32.totalorder %s46, %s47
    %p59 = scmp.eq.s32.totalorder %s16, 1
    %p60 = por %p58, %p59
    %p62 = scmp.ne.s32.totalorder %s47, %s61
    %p63 = scmp.eq.s32.totalorder %s16, 0
    %p64 = por %p62, %p63
    %s66 = sadd.s32 %s65, 1
    %p69 = scmp.eq.s32.totalorder %s10, 1
    %p70 = scmp.ne.s32.totalorder %s65, %s67
    %p71 = scmp.eq.s32.totalorder %s10, 0
    %p72 = por %p70, %p71
    %p73 = scmp.ne.s32.totalorder %s65, %s67
    %p74 = scmp.eq.s32.totalorder %s15, 1
    %p75 = por %p73, %p74
    %p76 = scmp.ne.s32.totalorder %s67, %s68
    %p77 = scmp.eq.s32.totalorder %s15, 0
    %p78 = por %p76, %p77
    %p79 = scmp.ne.s32.totalorder %s67, %s68
    %p80 = scmp.eq.s32.totalorder %s16, 1
    %p81 = por %p79, %p80
    %p83 = scmp.ne.s32.totalorder %s68, %s82
    %p84 = scmp.eq.s32.totalorder %s16, 0
    %p85 = por %p83, %p84
    %s87 = sadd.s32 %s86, 1
    %p90 = scmp.eq.s32.totalorder %s10, 1
    %p91 = scmp.ne.s32.totalorder %s86, %s88
    %p92 = scmp.eq.s32.totalorder %s10, 0
    %p93 = por %p91, %p92
    %p94 = scmp.ne.s32.totalorder %s86, %s88
    %p95 = scmp.eq.s32.totalorder %s15, 1
    %p96 = por %p94, %p95
    %p97 = scmp.ne.s32.totalorder %s88, %s89
    %p98 = scmp.eq.s32.totalorder %s15, 0
    %p99 = por %p97, %p98
    %p100 = scmp.ne.s32.totalorder %s88, %s89
    %p101 = scmp.eq.s32.totalorder %s16, 1
    %p102 = por %p100, %p101
    %p104 = scmp.ne.s32.totalorder %s89, %s103
    %p105 = scmp.eq.s32.totalorder %s16, 0
    %p106 = por %p104, %p105
    %s107 = ssub.s32 %s10, %s17
    %p108 = scmp.eq.s32.totalorder %s107, 0
    %s110 = sadd.s32 %s109, 1
    %s111 = scalar_select %p108, %s109, %s110
    %p114 = pneg %p108
    %p115 = scmp.eq.s32.totalorder %s10, 1
    %p116 = por %p114, %p115
    %p117 = scmp.ne.s32.totalorder %s109, %s112
    %p118 = scmp.eq.s32.totalorder %s10, 0
    %p119 = por %p117, %p118
    %p120 = scmp.ne.s32.totalorder %s109, %s112
    %p121 = scmp.eq.s32.totalorder %s15, 1
    %p122 = por %p120, %p121
    %p123 = scmp.ne.s32.totalorder %s112, %s113
    %p124 = scmp.eq.s32.totalorder %s15, 0
    %p125 = por %p123, %p124
    %p126 = scmp.ne.s32.totalorder %s112, %s113
    %p127 = scmp.eq.s32.totalorder %s16, 1
    %p128 = por %p126, %p127
    %p130 = scmp.ne.s32.totalorder %s113, %s129
    %p131 = scmp.eq.s32.totalorder %s16, 0
    %p132 = por %p130, %p131
    %p133 = scmp.le.s32.totalorder 1, %s10
    %p134 = scmp.lt.s32.totalorder %s10, 3
    %p135 = pnand %p133, %p134
    %p136 = pneg %p135
    // Predicated region
    $region9: #{make_dense_forward.1} parent=5 // pred_check
      _
    $region10: #{make_dense_forward.1} parent=5 // pred_check_branch
      %138 = sbr.rel (%p135) target = $region12
    $region11: #{make_dense_forward.1} parent=5 // pred_region
      %s139 = ssub.s32 %s10, 1
      // Predicated region
      $region13: #{make_dense_forward.1} parent=11 // pred_check
        %p140 = pneg %p57
      $region14: #{make_dense_forward.1} parent=11 // pred_check_branch
        %142 = sbr.rel (%p140) target = $region16
      $region15: #{make_dense_forward.1} parent=11 // pred_region
        _
      $region16: #{make_dense_forward.1} parent=11 // pred_fallthru
        _
      // Predicated region
      $region17: #{make_dense_forward.1} parent=11 // pred_check
        %p143 = pneg %p78
      $region18: #{make_dense_forward.1} parent=11 // pred_check_branch
        %145 = sbr.rel (%p143) target = $region20
      $region19: #{make_dense_forward.1} parent=11 // pred_region
        _
      $region20: #{make_dense_forward.1} parent=11 // pred_fallthru
        _
      // Predicated region
      $region21: #{make_dense_forward.1} parent=11 // pred_check
        %p146 = pneg %p99
      $region22: #{make_dense_forward.1} parent=11 // pred_check_branch
        %148 = sbr.rel (%p146) target = $region24
      $region23: #{make_dense_forward.1} parent=11 // pred_region
        _
      $region24: #{make_dense_forward.1} parent=11 // pred_fallthru
        _
    $region12: #{make_dense_forward.1} parent=5 // pred_fallthru
      _
    %p149 = scmp.lt.s32.totalorder %s10, 2
    // Predicated region
    $region25: #{make_dense_forward.1} parent=5 // pred_check
      %p150 = pneg %p149
    $region26: #{make_dense_forward.1} parent=5 // pred_check_branch
      %152 = sbr.rel (%p150) target = $region28
    $region27: #{make_dense_forward.1} parent=5 // pred_region
      // Predicated region
      $region29: #{make_dense_forward.1} parent=27 // pred_check
        %p153 = pneg %p30
      $region30: #{make_dense_forward.1} parent=27 // pred_check_branch
        %155 = sbr.rel (%p153) target = $region32
      $region31: #{make_dense_forward.1} parent=27 // pred_region
        %p156 = scmp.lt.s32.totalorder %s10, 1
        %s157 = scalar_select %p156, %s10, 1
        %s158 = smul.addr %s157, 2
        %s159 = smul.addr %s158, 4
        %s160 = scalar_lea.vmem %s0, %s159
      $region32: #{make_dense_forward.1} parent=27 // pred_fallthru
        _
    $region28: #{make_dense_forward.1} parent=5 // pred_fallthru
      _
    %p161 = scmp.le.s32.totalorder 1, %s10
    %p162 = scmp.lt.s32.totalorder %s10, 3
    %p163 = pnand %p161, %p162
    %p164 = pneg %p163
    // Predicated region
    $region33: #{make_dense_forward.1} parent=5 // pred_check
      _
    $region34: #{make_dense_forward.1} parent=5 // pred_check_branch
      %166 = sbr.rel (%p163) target = $region36
    $region35: #{make_dense_forward.1} parent=5 // pred_region
      %s167 = ssub.s32 %s10, 1
      %p168 = scmp.lt.s32.totalorder %s15, 1
      %s169 = scalar_select %p168, %s15, 1
      %s170 = smul.addr %s169, 2
      %s171 = smul.addr %s170, 4
      %s172 = scalar_lea.vmem %s0, %s171
      %p173 = pneg %p36
      %p174 = pneg %p33
      %p175 = pneg %p57
      %p176 = pneg %p54
      %p177 = pneg %p78
      %p178 = pneg %p75
      %p179 = pneg %p99
      %p180 = pneg %p96
      %p181 = pneg %p125
      %p182 = pneg %p122
      %p183 = scmp.lt.s32.totalorder %s15, 1
      %s184 = scalar_select %p183, %s15, 1
      %s185 = smul.addr %s184, 2
      %s186 = smul.addr %s185, 8
      %s187 = scalar_lea.vmem %s4, %s186
      %p188 = scmp.lt.s32.totalorder %s15, 1
      %s189 = scalar_select %p188, %s15, 1
      %s190 = smul.addr %s189, 2
      %s191 = smul.addr %s190, 4
      %s192 = scalar_lea.vmem %s0, %s191
      %p193 = scmp.lt.s32.totalorder %s15, 1
      %s194 = scalar_select %p193, %s15, 1
      %s195 = smul.addr %s194, 2
      %s196 = smul.addr %s195, 8
      %s197 = scalar_lea.vmem %s4, %s196
      %v199 = vld [vmem:[%s2] sm:$0xff]
      %v200 = vld [vmem:[%s192] sm:$0xff]
      %v202 = vcombine.high %v200, %v200
      %203 = vrot.lane.b32.xlu0 %v202, 17
      %v204 = vpop.permute.xlu0 %203
      %206 = vrot.lane.b32.xlu0 %v200, 17
      %v207 = vpop.permute.xlu0 %206
      %vm208 = vcmask 138240
      %v209 = vsel %vm208, %v207, %v204
      %v212 = vsel %vm208, %v204, %v207
      %v213 = vld [vmem:[%s3] sm:$0x3]
      %v215 = vlaneseq
      %v216 = vshrl.u32 %v215, 7
      %v217 = vsub.s32 0, %v216
      %v218 = vrot.slane %v213, %v217
      %v219 = vlaneseq
      %v220 = vshrl.u32 %v219, 7
      %v221 = vsub.s32 1, %v220
      %v222 = vrot.slane %v213, %v221
      %v225 = vmul.f32 %v212, %v218
      %v226 = vmul.f32 %v209, %v222
      %v227 = vld [vmem:[%s1] sm:$0xf]
      %v228 = vpack.c.bf16 %v225, %v225
      %v229 = vpack.c.bf16 %v226, %v226
      %230 = vrot.lane.b32.xlu0 %v202, 16
      %v231 = vpop.permute.xlu0 %230
      %233 = vrot.lane.b32.xlu0 %v200, 16
      %v234 = vpop.permute.xlu0 %233
      %vm235 = vcmask 130048
      %v236 = vsel %vm235, %v234, %v231
      %v239 = vsel %vm235, %v231, %v234
      %s240 = scalar_lea.vmem %s3, 2
      %v241 = vld [vmem:[%s240] sm:$0x3]
      %v243 = vlaneseq
      %v244 = vshrl.u32 %v243, 7
      %v245 = vsub.s32 0, %v244
      %v246 = vrot.slane %v241, %v245
      %v247 = vlaneseq
      %v248 = vshrl.u32 %v247, 7
      %v249 = vsub.s32 1, %v248
      %v250 = vrot.slane %v241, %v249
      %v253 = vmul.f32 %v239, %v246
      %v254 = vmul.f32 %v236, %v250
      %s255 = scalar_lea.vmem %s1, 4
      %v256 = vld [vmem:[%s255] sm:$0xf]
      %v257 = vpack.c.bf16 %v253, %v253
      %v258 = vpack.c.bf16 %v254, %v254
      %vm259 = vcmask 31744
      %v261 = vsel %vm259, %v256, 0
      %vm263 = vcmask 1041408
      %v265 = vsel %vm263, %v257, 0
      %v268 = vsel %vm263, %v258, 0
      %270 = vmatprep.subr.bf16.mxu0 %v268
      %271 = vmatpush1.bf16.msra.mxu0 %v265
      %272 = vmatprep.subr.bf16.mxu0 0
      %273 = vmatpush1.bf16.msra.mxu0 0
      %274 = vmatprep.subr.bf16.mxu0 0
      %275 = vmatpush1.bf16.msra.mxu0 0
      %276 = vmatprep.subr.bf16.mxu0 0
      %277 = vmatpush1.bf16.msra.mxu0 0
      %278 = vmatprep.subr.bf16.mxu0 0
      %279 = vmatpush1.bf16.msra.mxu0 0
      %280 = vmatprep.subr.bf16.mxu0 0
      %281 = vmatpush1.bf16.msra.mxu0 0
      %282 = vmatprep.subr.bf16.mxu0 0
      %283 = vmatpush1.bf16.msra.mxu0 0
      %284 = vmatprep.subr.bf16.mxu0 0
      %285 = vmatpush1.bf16.msra.mxu0 0
      %286 = vmatprep.subr.bf16.mxu0 0
      %287 = vmatpush1.bf16.msra.mxu0 0
      %288 = vmatprep.subr.bf16.mxu0 0
      %289 = vmatpush1.bf16.msra.mxu0 0
      %290 = vmatprep.subr.bf16.mxu0 0
      %291 = vmatpush1.bf16.msra.mxu0 0
      %292 = vmatprep.subr.bf16.mxu0 0
      %293 = vmatpush1.bf16.msra.mxu0 0
      %294 = vmatprep.subr.bf16.mxu0 0
      %295 = vmatpush1.bf16.msra.mxu0 0
      %296 = vmatprep.subr.bf16.mxu0 0
      %297 = vmatpush1.bf16.msra.mxu0 0
      %298 = vmatprep.subr.bf16.mxu0 0
      %299 = vmatpush1.bf16.msra.mxu0 0
      %300 = vmatprep.subr.bf16.mxu0 0
      %301 = vmatpush1.bf16.msra.mxu0 0
      %302 = vmatprep.mubr.bf16.mxu0 0
      %303 = vmatmul.mubr.bf16.gmra.mrb[0].mxu0 %v261
      %v304 = vpop.f32.mrb[0].mxu0
      %v305 = vadd.f32 0.0, %v304
      %v306 = vpop.f32.mrb[0].mxu0
      %v307 = vadd.f32 0.0, %v306
      %v308 = vpop.f32.mrb[0].mxu0
      %v309 = vpop.f32.mrb[0].mxu0
      %310 = vdwg.mxu0
      %v312 = vsel %vm259, %v227, 0
      %v315 = vsel %vm263, %v228, 0
      %v318 = vsel %vm263, %v229, 0
      %320 = vmatprep.subr.bf16.mxu0 %v318
      %321 = vmatpush1.bf16.msra.mxu0 %v315
      %322 = vmatprep.subr.bf16.mxu0 0
      %323 = vmatpush1.bf16.msra.mxu0 0
      %324 = vmatprep.subr.bf16.mxu0 0
      %325 = vmatpush1.bf16.msra.mxu0 0
      %326 = vmatprep.subr.bf16.mxu0 0
      %327 = vmatpush1.bf16.msra.mxu0 0
      %328 = vmatprep.subr.bf16.mxu0 0
      %329 = vmatpush1.bf16.msra.mxu0 0
      %330 = vmatprep.subr.bf16.mxu0 0
      %331 = vmatpush1.bf16.msra.mxu0 0
      %332 = vmatprep.subr.bf16.mxu0 0
      %333 = vmatpush1.bf16.msra.mxu0 0
      %334 = vmatprep.subr.bf16.mxu0 0
      %335 = vmatpush1.bf16.msra.mxu0 0
      %336 = vmatprep.subr.bf16.mxu0 0
      %337 = vmatpush1.bf16.msra.mxu0 0
      %338 = vmatprep.subr.bf16.mxu0 0
      %339 = vmatpush1.bf16.msra.mxu0 0
      %340 = vmatprep.subr.bf16.mxu0 0
      %341 = vmatpush1.bf16.msra.mxu0 0
      %342 = vmatprep.subr.bf16.mxu0 0
      %343 = vmatpush1.bf16.msra.mxu0 0
      %344 = vmatprep.subr.bf16.mxu0 0
      %345 = vmatpush1.bf16.msra.mxu0 0
      %346 = vmatprep.subr.bf16.mxu0 0
      %347 = vmatpush1.bf16.msra.mxu0 0
      %348 = vmatprep.subr.bf16.mxu0 0
      %349 = vmatpush1.bf16.msra.mxu0 0
      %350 = vmatprep.subr.bf16.mxu0 0
      %351 = vmatpush1.bf16.msra.mxu0 0
      %352 = vmatprep.mubr.bf16.mxu0 0
      %353 = vmatmul.mubr.bf16.gmra.mrb[0].mxu0 %v312
      %v354 = vpop.f32.mrb[0].mxu0
      %v355 = vadd.f32 %v305, %v354
      %v356 = vpop.f32.mrb[0].mxu0
      %v357 = vadd.f32 %v307, %v356
      %v358 = vpop.f32.mrb[0].mxu0
      %v359 = vpop.f32.mrb[0].mxu0
      %360 = vdwg.mxu0
      %361 = vrot.lane.b32.xlu0 %v202, 15
      %v362 = vpop.permute.xlu0 %361
      %364 = vrot.lane.b32.xlu0 %v200, 15
      %v365 = vpop.permute.xlu0 %364
      %vm366 = vcmask 121856
      %v367 = vsel %vm366, %v365, %v362
      %v370 = vsel %vm366, %v362, %v365
      %s371 = scalar_lea.vmem %s3, 4
      %v372 = vld [vmem:[%s371] sm:$0x3]
      %v374 = vlaneseq
      %v375 = vshrl.u32 %v374, 7
      %v376 = vsub.s32 0, %v375
      %v377 = vrot.slane %v372, %v376
      %v378 = vlaneseq
      %v379 = vshrl.u32 %v378, 7
      %v380 = vsub.s32 1, %v379
      %v381 = vrot.slane %v372, %v380
      %v384 = vmul.f32 %v370, %v377
      %v385 = vmul.f32 %v367, %v381
      %s386 = scalar_lea.vmem %s1, 8
      %v387 = vld [vmem:[%s386] sm:$0xf]
      %v388 = vpack.c.bf16 %v384, %v384
      %v389 = vpack.c.bf16 %v385, %v385
      %v391 = vsel %vm259, %v387, 0
      %v394 = vsel %vm263, %v388, 0
      %v397 = vsel %vm263, %v389, 0
      %399 = vmatprep.subr.bf16.mxu0 %v397
      %400 = vmatpush1.bf16.msra.mxu0 %v394
      %401 = vmatprep.subr.bf16.mxu0 0
      %402 = vmatpush1.bf16.msra.mxu0 0
      %403 = vmatprep.subr.bf16.mxu0 0
      %404 = vmatpush1.bf16.msra.mxu0 0
      %405 = vmatprep.subr.bf16.mxu0 0
      %406 = vmatpush1.bf16.msra.mxu0 0
      %407 = vmatprep.subr.bf16.mxu0 0
      %408 = vmatpush1.bf16.msra.mxu0 0
      %409 = vmatprep.subr.bf16.mxu0 0
      %410 = vmatpush1.bf16.msra.mxu0 0
      %411 = vmatprep.subr.bf16.mxu0 0
      %412 = vmatpush1.bf16.msra.mxu0 0
      %413 = vmatprep.subr.bf16.mxu0 0
      %414 = vmatpush1.bf16.msra.mxu0 0
      %415 = vmatprep.subr.bf16.mxu0 0
      %416 = vmatpush1.bf16.msra.mxu0 0
      %417 = vmatprep.subr.bf16.mxu0 0
      %418 = vmatpush1.bf16.msra.mxu0 0
      %419 = vmatprep.subr.bf16.mxu0 0
      %420 = vmatpush1.bf16.msra.mxu0 0
      %421 = vmatprep.subr.bf16.mxu0 0
      %422 = vmatpush1.bf16.msra.mxu0 0
      %423 = vmatprep.subr.bf16.mxu0 0
      %424 = vmatpush1.bf16.msra.mxu0 0
      %425 = vmatprep.subr.bf16.mxu0 0
      %426 = vmatpush1.bf16.msra.mxu0 0
      %427 = vmatprep.subr.bf16.mxu0 0
      %428 = vmatpush1.bf16.msra.mxu0 0
      %429 = vmatprep.subr.bf16.mxu0 0
      %430 = vmatpush1.bf16.msra.mxu0 0
      %431 = vmatprep.mubr.bf16.mxu0 0
      %432 = vmatmul.mubr.bf16.gmra.mrb[0].mxu0 %v391
      %v433 = vpop.f32.mrb[0].mxu0
      %v434 = vadd.f32 0.0, %v433
      %v435 = vpop.f32.mrb[0].mxu0
      %v436 = vadd.f32 0.0, %v435
      %v437 = vpop.f32.mrb[0].mxu0
      %v438 = vpop.f32.mrb[0].mxu0
      %439 = vdwg.mxu0
      %v440 = vadd.f32 %v355, %v434
      %v441 = vadd.f32 %v357, %v436
      %442 = vrot.lane.b32.xlu0 %v202, 1
      %v443 = vpop.permute.xlu0 %442
      %445 = vrot.lane.b32.xlu0 %v200, 1
      %v446 = vpop.permute.xlu0 %445
      %vm447 = vcmask 7168
      %v448 = vsel %vm447, %v446, %v443
      %v451 = vsel %vm447, %v443, %v446
      %s452 = scalar_lea.vmem %s3, 6
      %v453 = vld [vmem:[%s452] sm:$0x3]
      %v455 = vlaneseq
      %v456 = vshrl.u32 %v455, 7
      %v457 = vsub.s32 0, %v456
      %v458 = vrot.slane %v453, %v457
      %v459 = vlaneseq
      %v460 = vshrl.u32 %v459, 7
      %v461 = vsub.s32 1, %v460
      %v462 = vrot.slane %v453, %v461
      %v465 = vmul.f32 %v451, %v458
      %v466 = vmul.f32 %v448, %v462
      %s467 = scalar_lea.vmem %s1, 12
      %v468 = vld [vmem:[%s467] sm:$0xf]
      %v469 = vpack.c.bf16 %v465, %v465
      %v470 = vpack.c.bf16 %v466, %v466
      %v472 = vsel %vm259, %v468, 0
      %v475 = vsel %vm263, %v469, 0
      %v478 = vsel %vm263, %v470, 0
      %480 = vmatprep.subr.bf16.mxu0 %v478
      %481 = vmatpush1.bf16.msra.mxu0 %v475
      %482 = vmatprep.subr.bf16.mxu0 0
      %483 = vmatpush1.bf16.msra.mxu0 0
      %484 = vmatprep.subr.bf16.mxu0 0
      %485 = vmatpush1.bf16.msra.mxu0 0
      %486 = vmatprep.subr.bf16.mxu0 0
      %487 = vmatpush1.bf16.msra.mxu0 0
      %488 = vmatprep.subr.bf16.mxu0 0
      %489 = vmatpush1.bf16.msra.mxu0 0
      %490 = vmatprep.subr.bf16.mxu0 0
      %491 = vmatpush1.bf16.msra.mxu0 0
      %492 = vmatprep.subr.bf16.mxu0 0
      %493 = vmatpush1.bf16.msra.mxu0 0
      %494 = vmatprep.subr.bf16.mxu0 0
      %495 = vmatpush1.bf16.msra.mxu0 0
      %496 = vmatprep.subr.bf16.mxu0 0
      %497 = vmatpush1.bf16.msra.mxu0 0
      %498 = vmatprep.subr.bf16.mxu0 0
      %499 = vmatpush1.bf16.msra.mxu0 0
      %500 = vmatprep.subr.bf16.mxu0 0
      %501 = vmatpush1.bf16.msra.mxu0 0
      %502 = vmatprep.subr.bf16.mxu0 0
      %503 = vmatpush1.bf16.msra.mxu0 0
      %504 = vmatprep.subr.bf16.mxu0 0
      %505 = vmatpush1.bf16.msra.mxu0 0
      %506 = vmatprep.subr.bf16.mxu0 0
      %507 = vmatpush1.bf16.msra.mxu0 0
      %508 = vmatprep.subr.bf16.mxu0 0
      %509 = vmatpush1.bf16.msra.mxu0 0
      %510 = vmatprep.subr.bf16.mxu0 0
      %511 = vmatpush1.bf16.msra.mxu0 0
      %512 = vmatprep.mubr.bf16.mxu0 0
      %513 = vmatmul.mubr.bf16.gmra.mrb[0].mxu0 %v472
      %v514 = vpop.f32.mrb[0].mxu0
      %v515 = vadd.f32 0.0, %v514
      %v516 = vpop.f32.mrb[0].mxu0
      %v517 = vadd.f32 0.0, %v516
      %v518 = vpop.f32.mrb[0].mxu0
      %v519 = vpop.f32.mrb[0].mxu0
      %520 = vdwg.mxu0
      %v521 = vadd.f32 %v440, %v515
      %v522 = vadd.f32 %v441, %v517
      %s523 = scalar_lea.vmem %s1, 16
      %v524 = vld [vmem:[%s523] sm:$0xf]
      %v526 = vpack.c.bf16 %v200, %v200
      %v527 = vpack.c.bf16 %v202, %v202
      %v529 = vsel %vm259, %v524, 0
      %v532 = vsel %vm263, %v526, 0
      %v535 = vsel %vm263, %v527, 0
      %537 = vmatprep.subr.bf16.mxu0 %v535
      %538 = vmatpush1.bf16.msra.mxu0 %v532
      %539 = vmatprep.subr.bf16.mxu0 0
      %540 = vmatpush1.bf16.msra.mxu0 0
      %541 = vmatprep.subr.bf16.mxu0 0
      %542 = vmatpush1.bf16.msra.mxu0 0
      %543 = vmatprep.subr.bf16.mxu0 0
      %544 = vmatpush1.bf16.msra.mxu0 0
      %545 = vmatprep.subr.bf16.mxu0 0
      %546 = vmatpush1.bf16.msra.mxu0 0
      %547 = vmatprep.subr.bf16.mxu0 0
      %548 = vmatpush1.bf16.msra.mxu0 0
      %549 = vmatprep.subr.bf16.mxu0 0
      %550 = vmatpush1.bf16.msra.mxu0 0
      %551 = vmatprep.subr.bf16.mxu0 0
      %552 = vmatpush1.bf16.msra.mxu0 0
      %553 = vmatprep.subr.bf16.mxu0 0
      %554 = vmatpush1.bf16.msra.mxu0 0
      %555 = vmatprep.subr.bf16.mxu0 0
      %556 = vmatpush1.bf16.msra.mxu0 0
      %557 = vmatprep.subr.bf16.mxu0 0
      %558 = vmatpush1.bf16.msra.mxu0 0
      %559 = vmatprep.subr.bf16.mxu0 0
      %560 = vmatpush1.bf16.msra.mxu0 0
      %561 = vmatprep.subr.bf16.mxu0 0
      %562 = vmatpush1.bf16.msra.mxu0 0
      %563 = vmatprep.subr.bf16.mxu0 0
      %564 = vmatpush1.bf16.msra.mxu0 0
      %565 = vmatprep.subr.bf16.mxu0 0
      %566 = vmatpush1.bf16.msra.mxu0 0
      %567 = vmatprep.subr.bf16.mxu0 0
      %568 = vmatpush1.bf16.msra.mxu0 0
      %569 = vmatprep.mubr.bf16.mxu0 0
      %570 = vmatmul.mubr.bf16.gmra.mrb[0].mxu0 %v529
      %v571 = vpop.f32.mrb[0].mxu0
      %v572 = vadd.f32 0.0, %v571
      %v573 = vpop.f32.mrb[0].mxu0
      %v574 = vadd.f32 0.0, %v573
      %v575 = vpop.f32.mrb[0].mxu0
      %v576 = vpop.f32.mrb[0].mxu0
      %577 = vdwg.mxu0
      %v578 = vadd.f32 %v521, %v572
      %v579 = vadd.f32 %v522, %v574
      %580 = vrot.lane.b32.xlu0 %v200, 127
      %v581 = vpop.permute.xlu0 %580
      %582 = vrot.lane.b32.xlu0 %v202, 127
      %v583 = vpop.permute.xlu0 %582
      %vm584 = vcmask 1039360
      %v585 = vsel %vm584, %v581, %v583
      %v589 = vsel %vm584, %v583, %v581
      %s590 = scalar_lea.vmem %s3, 10
      %v591 = vld [vmem:[%s590] sm:$0x3]
      %v593 = vlaneseq
      %v594 = vshrl.u32 %v593, 7
      %v595 = vsub.s32 0, %v594
      %v596 = vrot.slane %v591, %v595
      %v597 = vlaneseq
      %v598 = vshrl.u32 %v597, 7
      %v599 = vsub.s32 1, %v598
      %v600 = vrot.slane %v591, %v599
      %v603 = vmul.f32 %v585, %v596
      %v604 = vmul.f32 %v589, %v600
      %s605 = scalar_lea.vmem %s1, 20
      %v606 = vld [vmem:[%s605] sm:$0xf]
      %v607 = vpack.c.bf16 %v603, %v603
      %v608 = vpack.c.bf16 %v604, %v604
      %v610 = vsel %vm259, %v606, 0
      %v613 = vsel %vm263, %v607, 0
      %v616 = vsel %vm263, %v608, 0
      %618 = vmatprep.subr.bf16.mxu0 %v616
      %619 = vmatpush1.bf16.msra.mxu0 %v613
      %620 = vmatprep.subr.bf16.mxu0 0
      %621 = vmatpush1.bf16.msra.mxu0 0
      %622 = vmatprep.subr.bf16.mxu0 0
      %623 = vmatpush1.bf16.msra.mxu0 0
      %624 = vmatprep.subr.bf16.mxu0 0
      %625 = vmatpush1.bf16.msra.mxu0 0
      %626 = vmatprep.subr.bf16.mxu0 0
      %627 = vmatpush1.bf16.msra.mxu0 0
      %628 = vmatprep.subr.bf16.mxu0 0
      %629 = vmatpush1.bf16.msra.mxu0 0
      %630 = vmatprep.subr.bf16.mxu0 0
      %631 = vmatpush1.bf16.msra.mxu0 0
      %632 = vmatprep.subr.bf16.mxu0 0
      %633 = vmatpush1.bf16.msra.mxu0 0
      %634 = vmatprep.subr.bf16.mxu0 0
      %635 = vmatpush1.bf16.msra.mxu0 0
      %636 = vmatprep.subr.bf16.mxu0 0
      %637 = vmatpush1.bf16.msra.mxu0 0
      %638 = vmatprep.subr.bf16.mxu0 0
      %639 = vmatpush1.bf16.msra.mxu0 0
      %640 = vmatprep.subr.bf16.mxu0 0
      %641 = vmatpush1.bf16.msra.mxu0 0
      %642 = vmatprep.subr.bf16.mxu0 0
      %643 = vmatpush1.bf16.msra.mxu0 0
      %644 = vmatprep.subr.bf16.mxu0 0
      %645 = vmatpush1.bf16.msra.mxu0 0
      %646 = vmatprep.subr.bf16.mxu0 0
      %647 = vmatpush1.bf16.msra.mxu0 0
      %648 = vmatprep.subr.bf16.mxu0 0
      %649 = vmatpush1.bf16.msra.mxu0 0
      %650 = vmatprep.mubr.bf16.mxu0 0
      %651 = vmatmul.mubr.bf16.gmra.mrb[0].mxu0 %v610
      %v652 = vpop.f32.mrb[0].mxu0
      %v653 = vadd.f32 0.0, %v652
      %v654 = vpop.f32.mrb[0].mxu0
      %v655 = vadd.f32 0.0, %v654
      %v656 = vpop.f32.mrb[0].mxu0
      %v657 = vpop.f32.mrb[0].mxu0
      %658 = vdwg.mxu0
      %v659 = vadd.f32 %v578, %v653
      %v660 = vadd.f32 %v579, %v655
      %661 = vrot.lane.b32.xlu0 %v200, 113
      %v662 = vpop.permute.xlu0 %661
      %663 = vrot.lane.b32.xlu0 %v202, 113
      %v664 = vpop.permute.xlu0 %663
      %vm665 = vcmask 924672
      %v666 = vsel %vm665, %v662, %v664
      %v670 = vsel %vm665, %v664, %v662
      %s671 = scalar_lea.vmem %s3, 12
      %v672 = vld [vmem:[%s671] sm:$0x3]
      %v674 = vlaneseq
      %v675 = vshrl.u32 %v674, 7
      %v676 = vsub.s32 0, %v675
      %v677 = vrot.slane %v672, %v676
      %v678 = vlaneseq
      %v679 = vshrl.u32 %v678, 7
      %v680 = vsub.s32 1, %v679
      %v681 = vrot.slane %v672, %v680
      %v684 = vmul.f32 %v666, %v677
      %v685 = vmul.f32 %v670, %v681
      %s686 = scalar_lea.vmem %s1, 24
      %v687 = vld [vmem:[%s686] sm:$0xf]
      %v688 = vpack.c.bf16 %v684, %v684
      %v689 = vpack.c.bf16 %v685, %v685
      %v691 = vsel %vm259, %v687, 0
      %v694 = vsel %vm263, %v688, 0
      %v697 = vsel %vm263, %v689, 0
      %699 = vmatprep.subr.bf16.mxu0 %v697
      %700 = vmatpush1.bf16.msra.mxu0 %v694
      %701 = vmatprep.subr.bf16.mxu0 0
      %702 = vmatpush1.bf16.msra.mxu0 0
      %703 = vmatprep.subr.bf16.mxu0 0
      %704 = vmatpush1.bf16.msra.mxu0 0
      %705 = vmatprep.subr.bf16.mxu0 0
      %706 = vmatpush1.bf16.msra.mxu0 0
      %707 = vmatprep.subr.bf16.mxu0 0
      %708 = vmatpush1.bf16.msra.mxu0 0
      %709 = vmatprep.subr.bf16.mxu0 0
      %710 = vmatpush1.bf16.msra.mxu0 0
      %711 = vmatprep.subr.bf16.mxu0 0
      %712 = vmatpush1.bf16.msra.mxu0 0
      %713 = vmatprep.subr.bf16.mxu0 0
      %714 = vmatpush1.bf16.msra.mxu0 0
      %715 = vmatprep.subr.bf16.mxu0 0
      %716 = vmatpush1.bf16.msra.mxu0 0
      %717 = vmatprep.subr.bf16.mxu0 0
      %718 = vmatpush1.bf16.msra.mxu0 0
      %719 = vmatprep.subr.bf16.mxu0 0
      %720 = vmatpush1.bf16.msra.mxu0 0
      %721 = vmatprep.subr.bf16.mxu0 0
      %722 = vmatpush1.bf16.msra.mxu0 0
      %723 = vmatprep.subr.bf16.mxu0 0
      %724 = vmatpush1.bf16.msra.mxu0 0
      %725 = vmatprep.subr.bf16.mxu0 0
      %726 = vmatpush1.bf16.msra.mxu0 0
      %727 = vmatprep.subr.bf16.mxu0 0
      %728 = vmatpush1.bf16.msra.mxu0 0
      %729 = vmatprep.subr.bf16.mxu0 0
      %730 = vmatpush1.bf16.msra.mxu0 0
      %731 = vmatprep.mubr.bf16.mxu0 0
      %732 = vmatmul.mubr.bf16.gmra.mrb[0].mxu0 %v691
      %v733 = vpop.f32.mrb[0].mxu0
      %v734 = vadd.f32 0.0, %v733
      %v735 = vpop.f32.mrb[0].mxu0
      %v736 = vadd.f32 0.0, %v735
      %v737 = vpop.f32.mrb[0].mxu0
      %v738 = vpop.f32.mrb[0].mxu0
      %739 = vdwg.mxu0
      %v740 = vadd.f32 %v659, %v734
      %v741 = vadd.f32 %v660, %v736
      %742 = vrot.lane.b32.xlu0 %v200, 112
      %v743 = vpop.permute.xlu0 %742
      %744 = vrot.lane.b32.xlu0 %v202, 112
      %v745 = vpop.permute.xlu0 %744
      %vm746 = vcmask 916480
      %v747 = vsel %vm746, %v743, %v745
      %v751 = vsel %vm746, %v745, %v743
      %s752 = scalar_lea.vmem %s3, 14
      %v753 = vld [vmem:[%s752] sm:$0x3]
      %v755 = vlaneseq
      %v756 = vshrl.u32 %v755, 7
      %v757 = vsub.s32 0, %v756
      %v758 = vrot.slane %v753, %v757
      %v759 = vlaneseq
      %v760 = vshrl.u32 %v759, 7
      %v761 = vsub.s32 1, %v760
      %v762 = vrot.slane %v753, %v761
      %v765 = vmul.f32 %v747, %v758
      %v766 = vmul.f32 %v751, %v762
      %s767 = scalar_lea.vmem %s1, 28
      %v768 = vld [vmem:[%s767] sm:$0xf]
      %v769 = vpack.c.bf16 %v765, %v765
      %v770 = vpack.c.bf16 %v766, %v766
      %v772 = vsel %vm259, %v768, 0
      %v775 = vsel %vm263, %v769, 0
      %v778 = vsel %vm263, %v770, 0
      %780 = vmatprep.subr.bf16.mxu0 %v778
      %781 = vmatpush1.bf16.msra.mxu0 %v775
      %782 = vmatprep.subr.bf16.mxu0 0
      %783 = vmatpush1.bf16.msra.mxu0 0
      %784 = vmatprep.subr.bf16.mxu0 0
      %785 = vmatpush1.bf16.msra.mxu0 0
      %786 = vmatprep.subr.bf16.mxu0 0
      %787 = vmatpush1.bf16.msra.mxu0 0
      %788 = vmatprep.subr.bf16.mxu0 0
      %789 = vmatpush1.bf16.msra.mxu0 0
      %790 = vmatprep.subr.bf16.mxu0 0
      %791 = vmatpush1.bf16.msra.mxu0 0
      %792 = vmatprep.subr.bf16.mxu0 0
      %793 = vmatpush1.bf16.msra.mxu0 0
      %794 = vmatprep.subr.bf16.mxu0 0
      %795 = vmatpush1.bf16.msra.mxu0 0
      %796 = vmatprep.subr.bf16.mxu0 0
      %797 = vmatpush1.bf16.msra.mxu0 0
      %798 = vmatprep.subr.bf16.mxu0 0
      %799 = vmatpush1.bf16.msra.mxu0 0
      %800 = vmatprep.subr.bf16.mxu0 0
      %801 = vmatpush1.bf16.msra.mxu0 0
      %802 = vmatprep.subr.bf16.mxu0 0
      %803 = vmatpush1.bf16.msra.mxu0 0
      %804 = vmatprep.subr.bf16.mxu0 0
      %805 = vmatpush1.bf16.msra.mxu0 0
      %806 = vmatprep.subr.bf16.mxu0 0
      %807 = vmatpush1.bf16.msra.mxu0 0
      %808 = vmatprep.subr.bf16.mxu0 0
      %809 = vmatpush1.bf16.msra.mxu0 0
      %810 = vmatprep.subr.bf16.mxu0 0
      %811 = vmatpush1.bf16.msra.mxu0 0
      %812 = vmatprep.mubr.bf16.mxu0 0
      %813 = vmatmul.mubr.bf16.gmra.mrb[0].mxu0 %v772
      %v814 = vpop.f32.mrb[0].mxu0
      %v815 = vadd.f32 0.0, %v814
      %v816 = vpop.f32.mrb[0].mxu0
      %v817 = vadd.f32 0.0, %v816
      %v818 = vpop.f32.mrb[0].mxu0
      %v819 = vpop.f32.mrb[0].mxu0
      %820 = vdwg.mxu0
      %v821 = vadd.f32 %v740, %v815
      %v822 = vadd.f32 %v741, %v817
      %823 = vrot.lane.b32.xlu0 %v200, 111
      %v824 = vpop.permute.xlu0 %823
      %825 = vrot.lane.b32.xlu0 %v202, 111
      %v826 = vpop.permute.xlu0 %825
      %vm827 = vcmask 908288
      %v828 = vsel %vm827, %v824, %v826
      %v832 = vsel %vm827, %v826, %v824
      %s833 = scalar_lea.vmem %s3, 16
      %v834 = vld [vmem:[%s833] sm:$0x3]
      %v836 = vlaneseq
      %v837 = vshrl.u32 %v836, 7
      %v838 = vsub.s32 0, %v837
      %v839 = vrot.slane %v834, %v838
      %v840 = vlaneseq
      %v841 = vshrl.u32 %v840, 7
      %v842 = vsub.s32 1, %v841
      %v843 = vrot.slane %v834, %v842
      %v846 = vmul.f32 %v828, %v839
      %v847 = vmul.f32 %v832, %v843
      %s848 = scalar_lea.vmem %s1, 32
      %v849 = vld [vmem:[%s848] sm:$0xf]
      %v850 = vpack.c.bf16 %v846, %v846
      %v851 = vpack.c.bf16 %v847, %v847
      %v853 = vsel %vm259, %v849, 0
      %v856 = vsel %vm263, %v850, 0
      %v859 = vsel %vm263, %v851, 0
      %861 = vmatprep.subr.bf16.mxu0 %v859
      %862 = vmatpush1.bf16.msra.mxu0 %v856
      %863 = vmatprep.subr.bf16.mxu0 0
      %864 = vmatpush1.bf16.msra.mxu0 0
      %865 = vmatprep.subr.bf16.mxu0 0
      %866 = vmatpush1.bf16.msra.mxu0 0
      %867 = vmatprep.subr.bf16.mxu0 0
      %868 = vmatpush1.bf16.msra.mxu0 0
      %869 = vmatprep.subr.bf16.mxu0 0
      %870 = vmatpush1.bf16.msra.mxu0 0
      %871 = vmatprep.subr.bf16.mxu0 0
      %872 = vmatpush1.bf16.msra.mxu0 0
      %873 = vmatprep.subr.bf16.mxu0 0
      %874 = vmatpush1.bf16.msra.mxu0 0
      %875 = vmatprep.subr.bf16.mxu0 0
      %876 = vmatpush1.bf16.msra.mxu0 0
      %877 = vmatprep.subr.bf16.mxu0 0
      %878 = vmatpush1.bf16.msra.mxu0 0
      %879 = vmatprep.subr.bf16.mxu0 0
      %880 = vmatpush1.bf16.msra.mxu0 0
      %881 = vmatprep.subr.bf16.mxu0 0
      %882 = vmatpush1.bf16.msra.mxu0 0
      %883 = vmatprep.subr.bf16.mxu0 0
      %884 = vmatpush1.bf16.msra.mxu0 0
      %885 = vmatprep.subr.bf16.mxu0 0
      %886 = vmatpush1.bf16.msra.mxu0 0
      %887 = vmatprep.subr.bf16.mxu0 0
      %888 = vmatpush1.bf16.msra.mxu0 0
      %889 = vmatprep.subr.bf16.mxu0 0
      %890 = vmatpush1.bf16.msra.mxu0 0
      %891 = vmatprep.subr.bf16.mxu0 0
      %892 = vmatpush1.bf16.msra.mxu0 0
      %893 = vmatprep.mubr.bf16.mxu0 0
      %894 = vmatmul.mubr.bf16.gmra.mrb[0].mxu0 %v853
      %v895 = vpop.f32.mrb[0].mxu0
      %v896 = vadd.f32 0.0, %v895
      %v897 = vpop.f32.mrb[0].mxu0
      %v898 = vadd.f32 0.0, %v897
      %v899 = vpop.f32.mrb[0].mxu0
      %v900 = vpop.f32.mrb[0].mxu0
      %901 = vdwg.mxu0
      %v902 = vadd.f32 %v821, %v896
      %v903 = vadd.f32 %v822, %v898
      %905 = vset.pattern.permute.xlu0 0
      %906 = vperm.xlu0 %905, %v199
      %v907 = vpop.permute.xlu0 %906
      %v909 = vadd.f32 %v902, %v907
      %v910 = vadd.f32 %v903, %v907
      %v911 = vmax.f32 %v909, 0.0
      %v912 = vmax.f32 %v910, 0.0
      %913 = vst [vmem:[%s197] sm:$0xff] %v911
      %914 = vst [vmem:[%s197 + $0x8] sm:$0xff] %v912
      %p915 = scmp.lt.s32.totalorder %s15, 1
      %s916 = scalar_select %p915, %s15, 1
      %s917 = smul.addr %s916, 2
      %s918 = smul.addr %s917, 8
      %s919 = scalar_lea.vmem %s4, %s918
      // Predicated region
      $region37: #{make_dense_forward.1} parent=35 // pred_check
        %p920 = pneg %p122
      $region38: #{make_dense_forward.1} parent=35 // pred_check_branch
        %922 = sbr.rel (%p920) target = $region40
      $region39: #{make_dense_forward.1} parent=35 // pred_region
        _
      $region40: #{make_dense_forward.1} parent=35 // pred_fallthru
        _
    $region36: #{make_dense_forward.1} parent=5 // pred_fallthru
      _
    %p923 = scmp.le.s32.totalorder 2, %s10
    // Predicated region
    $region41: #{make_dense_forward.1} parent=5 // pred_check
      %p924 = pneg %p923
    $region42: #{make_dense_forward.1} parent=5 // pred_check_branch
      %926 = sbr.rel (%p924) target = $region44
    $region43: #{make_dense_forward.1} parent=5 // pred_region
      %s927 = ssub.s32 %s10, 2
      // Predicated region
      $region45: #{make_dense_forward.1} parent=43 // pred_check
        %p928 = pneg %p128
      $region46: #{make_dense_forward.1} parent=43 // pred_check_branch
        %930 = sbr.rel (%p928) target = $region48
      $region47: #{make_dense_forward.1} parent=43 // pred_region
        %p931 = scmp.lt.s32.totalorder %s16, 1
        %s932 = scalar_select %p931, %s16, 1
        %s933 = smul.addr %s932, 2
        %s934 = smul.addr %s933, 8
        %s935 = scalar_lea.vmem %s4, %s934
      $region48: #{make_dense_forward.1} parent=43 // pred_fallthru
        _
    $region44: #{make_dense_forward.1} parent=5 // pred_fallthru
      _
  $region6: #{make_dense_forward.1} parent=0 // loop_footer
    %s14 = sadd.s32 1, %s10
  $region7: #{make_dense_forward.1} parent=0 // loop_footer_branch
    %9 = sbr.rel target = $region3
  $region8: #{make_dense_forward.1} parent=0 // loop_exit
    _

</llo_original>
